<compile_context>
chip_gen: v5e
topology: v5e:2x2
jax: 0.10.0
libtpu: 0.0.40
codegen_flags: <defaults>
</compile_context>

<pallas_src>
import functools
import math

import jax
import jax.numpy as jnp
from jax.experimental import pallas as pl
from jax.experimental.pallas import tpu as pltpu


# ------------------------------------------------------------------ kernel ----

def _mlp_kernel(xf_ref, xa_ref, wf_ref, wa_ref, vec0_ref, wh_ref, vech_ref,
                bfc_ref, o_ref, acc_ref, *, nk_feat, n_hidden_layers, hidden, eps):
    """Fused MLP forward.  Grid = (batch tile, K tile of first-layer Din)."""
    k = pl.program_id(1)
    nk = pl.num_programs(1)

    @pl.when(k == 0)
    def _():
        acc_ref[...] = jnp.zeros_like(acc_ref)

    # First layer, split-K: feature tiles first, adjacency tiles after.
    # Operands are bf16; accumulation is f32 in acc_ref.
    @pl.when(k < nk_feat)
    def _():
        acc_ref[...] += jnp.dot(xf_ref[...], wf_ref[...],
                                preferred_element_type=jnp.float32)

    @pl.when(k >= nk_feat)
    def _():
        acc_ref[...] += jnp.dot(xa_ref[...], wa_ref[...],
                                preferred_element_type=jnp.float32)

    # Finalize on the last K step: LN+ReLU, remaining layers, fc -- all in VMEM.
    @pl.when(k == nk - 1)
    def _():
        inv_h = 1.0 / float(hidden)
        vec0 = vec0_ref[...]                       # (4, H) resident f32
        b0, g0, be0, wfc = vec0[0:1], vec0[1:2], vec0[2:3], vec0[3:4]
        bfc = bfc_ref[...]                         # (1, 1)

        def ln_relu(y, gamma, beta):
            # Two-pass statistics (subtract mean, then square) + EUP rsqrt.
            mean = jnp.sum(y, axis=-1, keepdims=True) * inv_h
            d = y - mean
            var = jnp.sum(d * d, axis=-1, keepdims=True) * inv_h
            y = d * jax.lax.rsqrt(var + eps)
            return jnp.maximum(y * gamma + beta, 0.0)

        tb = acc_ref.shape[0]
        ch = min(tb, 128)                          # row chunk: bounds vreg pressure
        for r0 in range(0, tb, ch):                # static unroll over row chunks
            y = ln_relu(acc_ref[r0:r0 + ch, :] + b0, g0, be0)
            for i in range(n_hidden_layers):       # static unroll; weights resident
                vh = vech_ref[i]                   # (3, H) = [bias, gamma, beta]
                y = jnp.dot(y.astype(wh_ref.dtype), wh_ref[i],
                            preferred_element_type=jnp.float32) + vh[0:1]
                y = ln_relu(y, vh[1:2], vh[2:3])
            # fc (H -> 1) computed lane-major: (1,H) . (ch,H)^T -> (1, ch),
            # stored into the lane-dense output row (batch on the lane axis).
            z = jax.lax.dot_general(
                wfc, y, (((1,), (1,)), ((), ())),
                preferred_element_type=jnp.float32) + bfc
            o_ref[0, :, r0:r0 + ch] = z


# ------------------------------------------------------------- tiling utils ----

def _pick_batch_tile(b_pad):
    """b_pad is a multiple of 8; prefer the largest tile that still gives
    nb >= 2 grid rows (so the 'parallel' axis can shard across 2 TCs)."""
    for t in (512, 256, 128, 64, 32, 16, 8):
        if b_pad % t == 0 and b_pad // t >= 2:
            return t
    return min(b_pad, 8)


def _k_tiling(k_dim, tk):
    """Return (block_k, num_tiles, padded_k)."""
    if k_dim <= tk:
        return k_dim, 1, k_dim          # full-dim block, no padding needed
    nk = pl.cdiv(k_dim, tk)
    return tk, nk, nk * tk


# ----------------------------------------------------------------- forward ----

def mlp_forward(params, adjacency, features, *, tk=1024):
    B = adjacency.shape[0]
    H = params["b0"].shape[-1]
    L = params["num_layers"]
    Lh = L - 1
    Lh_eff = max(Lh, 1)

    f32, bf16 = jnp.float32, jnp.bfloat16

    xf = features.reshape(B, -1).astype(f32)      # (B, N*F)
    xa = adjacency.reshape(B, -1).astype(f32)     # (B, N*N)

    # Pad batch to a multiple of 8 sublanes (padded rows sliced off at the end).
    B_pad = ((B + 7) // 8) * 8
    if B_pad != B:
        xf = jnp.pad(xf, ((0, B_pad - B), (0, 0)))
        xa = jnp.pad(xa, ((0, B_pad - B), (0, 0)))

    wf = params["w_feat"].astype(f32)
    wa = params["w_adj"].astype(f32)

    # K tiling of the first-layer contraction; zero-pad if needed (zeros
    # contribute nothing to the dot, so numerics are unchanged).
    bkf, nkf, kfp = _k_tiling(xf.shape[1], tk)
    bka, nka, kap = _k_tiling(xa.shape[1], tk)
    if kfp != xf.shape[1]:
        pad = kfp - xf.shape[1]
        xf = jnp.pad(xf, ((0, 0), (0, pad)))
        wf = jnp.pad(wf, ((0, pad), (0, 0)))
    if kap != xa.shape[1]:
        pad = kap - xa.shape[1]
        xa = jnp.pad(xa, ((0, 0), (0, pad)))
        wa = jnp.pad(wa, ((0, pad), (0, 0)))

    # bf16 MXU operands; accumulation stays f32 inside the kernel.
    xf, xa = xf.astype(bf16), xa.astype(bf16)
    wf, wa = wf.astype(bf16), wa.astype(bf16)
    wh = params["w_hid"].astype(bf16)             # (Lh_eff, H, H)

    # Packed resident vectors (f32: used in the bias / LayerNorm epilogue).
    vec0 = jnp.concatenate(
        [params["b0"], params["g0"], params["be0"], params["w_fc_row"]],
        axis=0).astype(f32)                                          # (4, H)
    vech = jnp.stack(
        [params["b_hid"], params["g_hid"], params["be_hid"]],
        axis=1).astype(f32)                                          # (Lh_eff, 3, H)
    bfc = params["b_fc"].astype(f32)                                 # (1, 1)

    tb = _pick_batch_tile(B_pad)
    nb = B_pad // tb
    nk = nkf + nka

    kernel = functools.partial(
        _mlp_kernel, nk_feat=nkf, n_hidden_layers=Lh, hidden=H, eps=1e-5)

    # Clamped index maps: while a step uses the other input half, the unused
    # ref keeps its previous block index, so no redundant DMA is issued.
    def xf_map(b, k):
        return (b, jnp.minimum(k, nkf - 1))

    def wf_map(b, k):
        return (jnp.minimum(k, nkf - 1), 0)

    def xa_map(b, k):
        return (b, jnp.maximum(k - nkf, 0))

    def wa_map(b, k):
        return (jnp.maximum(k - nkf, 0), 0)

    const2 = lambda b, k: (0, 0)
    const3 = lambda b, k: (0, 0, 0)

    # Cost estimate (bf16 streams dominate the bytes).
    flops = 2 * B_pad * (kfp + kap) * H + Lh * 2 * B_pad * H * H + 2 * B_pad * H
    bytes_accessed = (2 * (B_pad * (kfp + kap) + (kfp + kap) * H + Lh_eff * H * H)
                      + 4 * (4 * H + Lh_eff * 3 * H + 1 + B_pad))
    cost = pl.CostEstimate(flops=int(flops), transcendentals=int(B_pad * L),
                           bytes_accessed=int(bytes_accessed))

    # Explicit VMEM budget (v7x only has 64 MiB physical per TensorCore).
    est = 4 * (tb * (bkf + bka) + (bkf + bka) * H)                 # bf16 x 2 buffers
    est += 2 * (2 * Lh_eff * H * H + 4 * (4 * H + Lh_eff * 3 * H + 1))
    est += 4 * tb * H + 8 * tb
    vmem_limit = int(min(max(2 * est, 32 * 1024 * 1024), 64 * 1024 * 1024))

    out = pl.pallas_call(
        kernel,
        out_shape=jax.ShapeDtypeStruct((nb, 1, tb), f32),   # lane-dense: batch on lanes
        grid_spec=pltpu.PrefetchScalarGridSpec(
            num_scalar_prefetch=0,
            grid=(nb, nk),
            in_specs=[
                pl.BlockSpec((tb, bkf), xf_map),      # features (flattened, bf16)
                pl.BlockSpec((tb, bka), xa_map),      # adjacency (flattened, bf16)
                pl.BlockSpec((bkf, H), wf_map),       # first-layer W (feature rows)
                pl.BlockSpec((bka, H), wa_map),       # first-layer W (adjacency rows)
                pl.BlockSpec((4, H), const2),         # [b0, gamma0, beta0, w_fc] resident
                pl.BlockSpec(wh.shape, const3),       # hidden weights (Lh,H,H) resident
                pl.BlockSpec(vech.shape, const3),     # hidden [b, gamma, beta] (Lh,3,H)
                pl.BlockSpec((1, 1), const2),         # fc bias
            ],
            out_specs=pl.BlockSpec((1, 1, tb), lambda b, k: (b, 0, 0)),
            scratch_shapes=[pltpu.VMEM((tb, H), jnp.float32)],
        ),
        compiler_params=pltpu.CompilerParams(
            dimension_semantics=("parallel", "arbitrary"),
            vmem_limit_bytes=vmem_limit),
        cost_estimate=cost,
    )(xf, xa, wf, wa, vec0, wh, vech, bfc)

    return out.reshape(B_pad, 1)[:B]


# -------------------------------------------------- deterministic parameters ----

def init_params(key, num_nodes, num_features, num_layers, num_hidden):
    """PyTorch-default-style init; first-layer weight stored split as
    [features | adjacency] halves so the kernel can skip the concat."""
    nf = num_nodes * num_features
    na = num_nodes * num_nodes
    indepth = nf + na
    H, L = num_hidden, num_layers

    def linear(k, fan_in, shape_w, shape_b):
        kw, kb = jax.random.split(k)
        bound = 1.0 / math.sqrt(fan_in)
        w = jax.random.uniform(kw, shape_w, jnp.float32, -bound, bound)
        b = jax.random.uniform(kb, shape_b, jnp.float32, -bound, bound)
        return w, b

    key, k0 = jax.random.split(key)
    w0, b0 = linear(k0, indepth, (indepth, H), (1, H))
    params = {
        "w_feat": w0[:nf], "w_adj": w0[nf:], "b0": b0,
        "g0": jnp.ones((1, H), jnp.float32), "be0": jnp.zeros((1, H), jnp.float32),
        "num_layers": L,
    }
    whs, bhs = [], []
    for _ in range(L - 1):
        key, ki = jax.random.split(key)
        w, b = linear(ki, H, (H, H), (H,))
        whs.append(w)
        bhs.append(b)
    if L - 1 == 0:  # dummy (unused) stack so the kernel signature is static
        whs = [jnp.zeros((H, H), jnp.float32)]
        bhs = [jnp.zeros((H,), jnp.float32)]
    params["w_hid"] = jnp.stack(whs)                                   # (Lh_eff, H, H)
    params["b_hid"] = jnp.stack(bhs)                                   # (Lh_eff, H)
    params["g_hid"] = jnp.ones((max(L - 1, 1), H), jnp.float32)
    params["be_hid"] = jnp.zeros((max(L - 1, 1), H), jnp.float32)
    key, kf = jax.random.split(key)
    wfc, bfc = linear(kf, H, (1, H), (1, 1))
    params["w_fc_row"] = wfc
    params["b_fc"] = bfc
    return params


# --------------------------------------------------------- pure-JAX reference ----

def mlp_reference(params, adjacency, features):
    B = adjacency.shape[0]
    x = jnp.concatenate(
        [features.reshape(B, -1), adjacency.reshape(B, -1)], axis=1
    ).astype(jnp.float32)
    L = params["num_layers"]
    ws = [jnp.concatenate([params["w_feat"], params["w_adj"]], axis=0)]
    bs, gs, bts = [params["b0"][0]], [params["g0"][0]], [params["be0"][0]]
    for i in range(L - 1):
        ws.append(params["w_hid"][i])
        bs.append(params["b_hid"][i])
        gs.append(params["g_hid"][i])
        bts.append(params["be_hid"][i])
    for w, b, g, bt in zip(ws, bs, gs, bts):
        y = x @ w + b
        mean = jnp.mean(y, axis=-1, keepdims=True)
        var = jnp.mean((y - mean) ** 2, axis=-1, keepdims=True)
        x = jnp.maximum((y - mean) * jax.lax.rsqrt(var + 1e-5) * g + bt, 0.0)
    return x @ params["w_fc_row"].T + params["b_fc"]


if __name__ == "__main__":
    # Small, module-consistent shapes; hidden width chosen lane-dense (128).
    B, N, F = 2, 4, 8
    NUM_LAYERS, NHID = 2, 128

    key = jax.random.PRNGKey(0)
    k_adj, k_feat, k_params = jax.random.split(key, 3)

    adjacency = jax.random.uniform(k_adj, (B, N, N), jnp.float32)
    features = jax.random.normal(k_feat, (B, N, F), jnp.float32)

    params = init_params(k_params, N, F, NUM_LAYERS, NHID)

    out = jax.block_until_ready(mlp_forward(params, adjacency, features))
    ref = mlp_reference(params, adjacency, features)

    assert out.shape == (B, 1), out.shape
    # bf16 matmul operands (f32 accumulation) vs. the all-f32 reference.
    assert jnp.allclose(out, ref, atol=5e-2, rtol=5e-2), (out, ref)
    print("KERNEL_OK")
</pallas_src>

<mosaic_0001>
module attributes {stable_mosaic.version = 11 : i64} {
  func.func @_mlp_kernel(%arg0: i32, %arg1: i32, %arg2: memref<8x32xbf16, #tpu.memory_space<vmem>>, %arg3: memref<8x16xbf16, #tpu.memory_space<vmem>>, %arg4: memref<32x128xbf16, #tpu.memory_space<vmem>>, %arg5: memref<16x128xbf16, #tpu.memory_space<vmem>>, %arg6: memref<4x128xf32, #tpu.memory_space<vmem>>, %arg7: memref<1x128x128xbf16, #tpu.memory_space<vmem>>, %arg8: memref<1x3x128xf32, #tpu.memory_space<vmem>>, %arg9: memref<1x1xf32, #tpu.memory_space<vmem>>, %arg10: memref<1x1x8xf32, #tpu.memory_space<vmem>>, %arg11: memref<8x128xf32, #tpu.memory_space<vmem>>) attributes {dimension_semantics = [#tpu.dimension_semantics<parallel>, #tpu.dimension_semantics<arbitrary>], iteration_bounds = array<i64: 1, 2>, scalar_prefetch = 0 : i64, scratch_operands = 1 : i64, tpu.core_type = #tpu.core_type<tc>, window_params = [{transform_indices = @transform_0, window_bounds = array<i64: 8, 32>}, {transform_indices = @transform_1, window_bounds = array<i64: 8, 16>}, {transform_indices = @transform_2, window_bounds = array<i64: 32, 128>}, {transform_indices = @transform_3, window_bounds = array<i64: 16, 128>}, {pipeline_mode = #tpu.pipeline_mode<synchronous>, transform_indices = @transform_4, window_bounds = array<i64: 4, 128>}, {pipeline_mode = #tpu.pipeline_mode<synchronous>, transform_indices = @transform_5, window_bounds = array<i64: 1, 128, 128>}, {pipeline_mode = #tpu.pipeline_mode<synchronous>, transform_indices = @transform_6, window_bounds = array<i64: 1, 3, 128>}, {pipeline_mode = #tpu.pipeline_mode<synchronous>, transform_indices = @transform_7, window_bounds = array<i64: 1, 1>}, {transform_indices = @transform_8, window_bounds = array<i64: 1, 1, 8>}]} {
    %c0_i32 = arith.constant 0 : i32
    %0 = arith.cmpi eq, %arg1, %c0_i32 : i32
    %1 = arith.extui %0 : i1 to i32
    %c0_i32_0 = arith.constant 0 : i32
    %2 = arith.cmpi ne, %1, %c0_i32_0 : i32
    scf.if %2 {
      %cst = arith.constant 0.000000e+00 : f32
      %12 = vector.broadcast %cst : f32 to vector<8x128xf32>
      %c0 = arith.constant 0 : index
      %c0_6 = arith.constant 0 : index
      %13 = vector.load %arg11[%c0, %c0_6] : memref<8x128xf32, #tpu.memory_space<vmem>>, vector<8x128xf32>
      tpu.vector_store %arg11[%c0, %c0_6], %12 {strides = array<i32>} : memref<8x128xf32, #tpu.memory_space<vmem>>, vector<8x128xf32>,
    } else {
    }
    %c1_i32 = arith.constant 1 : i32
    %3 = arith.cmpi slt, %arg1, %c1_i32 : i32
    %4 = arith.extui %3 : i1 to i32
    %c0_i32_1 = arith.constant 0 : i32
    %5 = arith.cmpi ne, %4, %c0_i32_1 : i32
    scf.if %5 {
      %c0 = arith.constant 0 : index
      %c0_6 = arith.constant 0 : index
      %12 = vector.load %arg11[%c0, %c0_6] : memref<8x128xf32, #tpu.memory_space<vmem>>, vector<8x128xf32>
      %c0_7 = arith.constant 0 : index
      %c0_8 = arith.constant 0 : index
      %13 = vector.load %arg2[%c0_7, %c0_8] : memref<8x32xbf16, #tpu.memory_space<vmem>>, vector<8x32xbf16>
      %c0_9 = arith.constant 0 : index
      %c0_10 = arith.constant 0 : index
      %14 = vector.load %arg4[%c0_9, %c0_10] : memref<32x128xbf16, #tpu.memory_space<vmem>>, vector<32x128xbf16>
      %cst = arith.constant dense<0.000000e+00> : vector<8x128xf32>
      %15 = tpu.matmul %13, %14, %cst {dimension_numbers = #tpu.dot_dimension_numbers<[1], [0], [0], [1], [0, 0, 1, 1], [], []>} : vector<8x32xbf16>, vector<32x128xbf16>, vector<8x128xf32> -> vector<8x128xf32>
      %16 = arith.addf %12, %15 : vector<8x128xf32>
      %c0_11 = arith.constant 0 : index
      %c0_12 = arith.constant 0 : index
      %17 = vector.load %arg11[%c0_11, %c0_12] : memref<8x128xf32, #tpu.memory_space<vmem>>, vector<8x128xf32>
      tpu.vector_store %arg11[%c0_11, %c0_12], %16 {strides = array<i32>} : memref<8x128xf32, #tpu.memory_space<vmem>>, vector<8x128xf32>,
    } else {
    }
    %c1_i32_2 = arith.constant 1 : i32
    %6 = arith.cmpi sge, %arg1, %c1_i32_2 : i32
    %7 = arith.extui %6 : i1 to i32
    %c0_i32_3 = arith.constant 0 : i32
    %8 = arith.cmpi ne, %7, %c0_i32_3 : i32
    scf.if %8 {
      %c0 = arith.constant 0 : index
      %c0_6 = arith.constant 0 : index
      %12 = vector.load %arg11[%c0, %c0_6] : memref<8x128xf32, #tpu.memory_space<vmem>>, vector<8x128xf32>
      %c0_7 = arith.constant 0 : index
      %c0_8 = arith.constant 0 : index
      %13 = vector.load %arg3[%c0_7, %c0_8] : memref<8x16xbf16, #tpu.memory_space<vmem>>, vector<8x16xbf16>
      %c0_9 = arith.constant 0 : index
      %c0_10 = arith.constant 0 : index
      %14 = vector.load %arg5[%c0_9, %c0_10] : memref<16x128xbf16, #tpu.memory_space<vmem>>, vector<16x128xbf16>
      %cst = arith.constant dense<0.000000e+00> : vector<8x128xf32>
      %15 = tpu.matmul %13, %14, %cst {dimension_numbers = #tpu.dot_dimension_numbers<[1], [0], [0], [1], [0, 0, 1, 1], [], []>} : vector<8x16xbf16>, vector<16x128xbf16>, vector<8x128xf32> -> vector<8x128xf32>
      %16 = arith.addf %12, %15 : vector<8x128xf32>
      %c0_11 = arith.constant 0 : index
      %c0_12 = arith.constant 0 : index
      %17 = vector.load %arg11[%c0_11, %c0_12] : memref<8x128xf32, #tpu.memory_space<vmem>>, vector<8x128xf32>
      tpu.vector_store %arg11[%c0_11, %c0_12], %16 {strides = array<i32>} : memref<8x128xf32, #tpu.memory_space<vmem>>, vector<8x128xf32>,
    } else {
    }
    %c1_i32_4 = arith.constant 1 : i32
    %9 = arith.cmpi eq, %arg1, %c1_i32_4 : i32
    %10 = arith.extui %9 : i1 to i32
    %c0_i32_5 = arith.constant 0 : i32
    %11 = arith.cmpi ne, %10, %c0_i32_5 : i32
    scf.if %11 {
      %c0 = arith.constant 0 : index
      %c0_6 = arith.constant 0 : index
      %12 = vector.load %arg6[%c0, %c0_6] : memref<4x128xf32, #tpu.memory_space<vmem>>, vector<4x128xf32>
      %13 = vector.extract_strided_slice %12 {offsets = [0, 0], sizes = [1, 128], strides = [1, 1]} : vector<4x128xf32> to vector<1x128xf32>
      %14 = vector.extract_strided_slice %12 {offsets = [1, 0], sizes = [1, 128], strides = [1, 1]} : vector<4x128xf32> to vector<1x128xf32>
      %15 = vector.extract_strided_slice %12 {offsets = [2, 0], sizes = [1, 128], strides = [1, 1]} : vector<4x128xf32> to vector<1x128xf32>
      %16 = vector.extract_strided_slice %12 {offsets = [3, 0], sizes = [1, 128], strides = [1, 1]} : vector<4x128xf32> to vector<1x128xf32>
      %c0_7 = arith.constant 0 : index
      %c0_8 = arith.constant 0 : index
      %17 = vector.load %arg9[%c0_7, %c0_8] : memref<1x1xf32, #tpu.memory_space<vmem>>, vector<1x1xf32>
      %c0_9 = arith.constant 0 : index
      %c0_10 = arith.constant 0 : index
      %18 = vector.load %arg11[%c0_9, %c0_10] : memref<8x128xf32, #tpu.memory_space<vmem>>, vector<8x128xf32>
      %19 = vector.broadcast %13 : vector<1x128xf32> to vector<8x128xf32>
      %20 = arith.addf %18, %19 : vector<8x128xf32>
      %cst = arith.constant dense<0.000000e+00> : vector<8xf32>
      %21 = vector.multi_reduction <add>, %20, %cst [1] : vector<8x128xf32> to vector<8xf32>
      %22 = vector.shape_cast %21 : vector<8xf32> to vector<8x1xf32>
      %cst_11 = arith.constant 7.812500e-03 : f32
      %23 = vector.broadcast %cst_11 : f32 to vector<8x1xf32>
      %24 = arith.mulf %22, %23 : vector<8x1xf32>
      %25 = vector.broadcast %24 : vector<8x1xf32> to vector<8x128xf32>
      %26 = arith.subf %20, %25 : vector<8x128xf32>
      %27 = arith.mulf %26, %26 : vector<8x128xf32>
      %cst_12 = arith.constant dense<0.000000e+00> : vector<8xf32>
      %28 = vector.multi_reduction <add>, %27, %cst_12 [1] : vector<8x128xf32> to vector<8xf32>
      %29 = vector.shape_cast %28 : vector<8xf32> to vector<8x1xf32>
      %cst_13 = arith.constant 7.812500e-03 : f32
      %30 = vector.broadcast %cst_13 : f32 to vector<8x1xf32>
      %31 = arith.mulf %29, %30 : vector<8x1xf32>
      %cst_14 = arith.constant 9.99999974E-6 : f32
      %32 = vector.broadcast %cst_14 : f32 to vector<8x1xf32>
      %33 = arith.addf %31, %32 : vector<8x1xf32>
      %34 = math.rsqrt %33 : vector<8x1xf32>
      %35 = vector.broadcast %34 : vector<8x1xf32> to vector<8x128xf32>
      %36 = arith.mulf %26, %35 : vector<8x128xf32>
      %37 = vector.broadcast %14 : vector<1x128xf32> to vector<8x128xf32>
      %38 = arith.mulf %36, %37 : vector<8x128xf32>
      %39 = vector.broadcast %15 : vector<1x128xf32> to vector<8x128xf32>
      %40 = arith.addf %38, %39 : vector<8x128xf32>
      %cst_15 = arith.constant 0.000000e+00 : f32
      %41 = vector.broadcast %cst_15 : f32 to vector<8x128xf32>
      %42 = arith.maximumf %40, %41 : vector<8x128xf32>
      %c0_16 = arith.constant 0 : index
      %c0_17 = arith.constant 0 : index
      %c0_18 = arith.constant 0 : index
      %43 = vector.load %arg8[%c0_16, %c0_17, %c0_18] : memref<1x3x128xf32, #tpu.memory_space<vmem>>, vector<1x3x128xf32>
      %44 = vector.shape_cast %43 : vector<1x3x128xf32> to vector<3x128xf32>
      %45 = arith.truncf %42 : vector<8x128xf32> to vector<8x128xbf16>
      %c0_19 = arith.constant 0 : index
      %c0_20 = arith.constant 0 : index
      %c0_21 = arith.constant 0 : index
      %46 = vector.load %arg7[%c0_19, %c0_20, %c0_21] : memref<1x128x128xbf16, #tpu.memory_space<vmem>>, vector<1x128x128xbf16>
      %47 = vector.shape_cast %46 : vector<1x128x128xbf16> to vector<128x128xbf16>
      %cst_22 = arith.constant dense<0.000000e+00> : vector<8x128xf32>
      %48 = tpu.matmul %45, %47, %cst_22 {dimension_numbers = #tpu.dot_dimension_numbers<[1], [0], [0], [1], [0, 0, 1, 1], [], []>} : vector<8x128xbf16>, vector<128x128xbf16>, vector<8x128xf32> -> vector<8x128xf32>
      %49 = vector.extract_strided_slice %44 {offsets = [0, 0], sizes = [1, 128], strides = [1, 1]} : vector<3x128xf32> to vector<1x128xf32>
      %50 = vector.broadcast %49 : vector<1x128xf32> to vector<8x128xf32>
      %51 = arith.addf %48, %50 : vector<8x128xf32>
      %52 = vector.extract_strided_slice %44 {offsets = [1, 0], sizes = [1, 128], strides = [1, 1]} : vector<3x128xf32> to vector<1x128xf32>
      %53 = vector.extract_strided_slice %44 {offsets = [2, 0], sizes = [1, 128], strides = [1, 1]} : vector<3x128xf32> to vector<1x128xf32>
      %cst_23 = arith.constant dense<0.000000e+00> : vector<8xf32>
      %54 = vector.multi_reduction <add>, %51, %cst_23 [1] : vector<8x128xf32> to vector<8xf32>
      %55 = vector.shape_cast %54 : vector<8xf32> to vector<8x1xf32>
      %cst_24 = arith.constant 7.812500e-03 : f32
      %56 = vector.broadcast %cst_24 : f32 to vector<8x1xf32>
      %57 = arith.mulf %55, %56 : vector<8x1xf32>
      %58 = vector.broadcast %57 : vector<8x1xf32> to vector<8x128xf32>
      %59 = arith.subf %51, %58 : vector<8x128xf32>
      %60 = arith.mulf %59, %59 : vector<8x128xf32>
      %cst_25 = arith.constant dense<0.000000e+00> : vector<8xf32>
      %61 = vector.multi_reduction <add>, %60, %cst_25 [1] : vector<8x128xf32> to vector<8xf32>
      %62 = vector.shape_cast %61 : vector<8xf32> to vector<8x1xf32>
      %cst_26 = arith.constant 7.812500e-03 : f32
      %63 = vector.broadcast %cst_26 : f32 to vector<8x1xf32>
      %64 = arith.mulf %62, %63 : vector<8x1xf32>
      %cst_27 = arith.constant 9.99999974E-6 : f32
      %65 = vector.broadcast %cst_27 : f32 to vector<8x1xf32>
      %66 = arith.addf %64, %65 : vector<8x1xf32>
      %67 = math.rsqrt %66 : vector<8x1xf32>
      %68 = vector.broadcast %67 : vector<8x1xf32> to vector<8x128xf32>
      %69 = arith.mulf %59, %68 : vector<8x128xf32>
      %70 = vector.broadcast %52 : vector<1x128xf32> to vector<8x128xf32>
      %71 = arith.mulf %69, %70 : vector<8x128xf32>
      %72 = vector.broadcast %53 : vector<1x128xf32> to vector<8x128xf32>
      %73 = arith.addf %71, %72 : vector<8x128xf32>
      %cst_28 = arith.constant 0.000000e+00 : f32
      %74 = vector.broadcast %cst_28 : f32 to vector<8x128xf32>
      %75 = arith.maximumf %73, %74 : vector<8x128xf32>
      %cst_29 = arith.constant dense<0.000000e+00> : vector<1x8xf32>
      %76 = tpu.matmul %16, %75, %cst_29 {dimension_numbers = #tpu.dot_dimension_numbers<[1], [1], [0], [0], [0, 0, 1, 0], [], []>} : vector<1x128xf32>, vector<8x128xf32>, vector<1x8xf32> -> vector<1x8xf32>
      %77 = vector.broadcast %17 : vector<1x1xf32> to vector<1x8xf32>
      %78 = arith.addf %76, %77 : vector<1x8xf32>
      %c0_30 = arith.constant 0 : index
      %c0_31 = arith.constant 0 : index
      %c0_32 = arith.constant 0 : index
      %79 = vector.load %arg10[%c0_30, %c0_31, %c0_32] : memref<1x1x8xf32, #tpu.memory_space<vmem>>, vector<1x1x8xf32>
      %80 = vector.shape_cast %79 : vector<1x1x8xf32> to vector<1x8xf32>
      %81 = vector.shape_cast %78 : vector<1x8xf32> to vector<1x1x8xf32>
      tpu.vector_store %arg10[%c0_30, %c0_31, %c0_32], %81 {strides = array<i32>} : memref<1x1x8xf32, #tpu.memory_space<vmem>>, vector<1x1x8xf32>,
    } else {
    }
    return
  }
  func.func @transform_0(%arg0: i32, %arg1: i32) -> (i32, i32) {
    %c0_i32 = arith.constant 0 : i32
    %0 = arith.minsi %arg1, %c0_i32 : i32
    %c0_i32_0 = arith.constant 0 : i32
    return %arg0, %0 : i32, i32
  }
  func.func @transform_1(%arg0: i32, %arg1: i32) -> (i32, i32) {
    %c1_i32 = arith.constant 1 : i32
    %0 = arith.subi %arg1, %c1_i32 : i32
    %c0_i32 = arith.constant 0 : i32
    %1 = arith.maxsi %0, %c0_i32 : i32
    %c0_i32_0 = arith.constant 0 : i32
    return %arg0, %1 : i32, i32
  }
  func.func @transform_2(%arg0: i32, %arg1: i32) -> (i32, i32) {
    %c0_i32 = arith.constant 0 : i32
    %0 = arith.minsi %arg1, %c0_i32 : i32
    %c0_i32_0 = arith.constant 0 : i32
    %c0_i32_1 = arith.constant 0 : i32
    return %0, %c0_i32_0 : i32, i32
  }
  func.func @transform_3(%arg0: i32, %arg1: i32) -> (i32, i32) {
    %c1_i32 = arith.constant 1 : i32
    %0 = arith.subi %arg1, %c1_i32 : i32
    %c0_i32 = arith.constant 0 : i32
    %1 = arith.maxsi %0, %c0_i32 : i32
    %c0_i32_0 = arith.constant 0 : i32
    %c0_i32_1 = arith.constant 0 : i32
    return %1, %c0_i32_0 : i32, i32
  }
  func.func @transform_4(%arg0: i32, %arg1: i32) -> (i32, i32) {
    %c0_i32 = arith.constant 0 : i32
    %c0_i32_0 = arith.constant 0 : i32
    %c0_i32_1 = arith.constant 0 : i32
    return %c0_i32, %c0_i32_0 : i32, i32
  }
  func.func @transform_5(%arg0: i32, %arg1: i32) -> (i32, i32, i32) {
    %c0_i32 = arith.constant 0 : i32
    %c0_i32_0 = arith.constant 0 : i32
    %c0_i32_1 = arith.constant 0 : i32
    %c0_i32_2 = arith.constant 0 : i32
    return %c0_i32, %c0_i32_0, %c0_i32_1 : i32, i32, i32
  }
  func.func @transform_6(%arg0: i32, %arg1: i32) -> (i32, i32, i32) {
    %c0_i32 = arith.constant 0 : i32
    %c0_i32_0 = arith.constant 0 : i32
    %c0_i32_1 = arith.constant 0 : i32
    %c0_i32_2 = arith.constant 0 : i32
    return %c0_i32, %c0_i32_0, %c0_i32_1 : i32, i32, i32
  }
  func.func @transform_7(%arg0: i32, %arg1: i32) -> (i32, i32) {
    %c0_i32 = arith.constant 0 : i32
    %c0_i32_0 = arith.constant 0 : i32
    %c0_i32_1 = arith.constant 0 : i32
    return %c0_i32, %c0_i32_0 : i32, i32
  }
  func.func @transform_8(%arg0: i32, %arg1: i32) -> (i32, i32, i32) {
    %c0_i32 = arith.constant 0 : i32
    %c0_i32_0 = arith.constant 0 : i32
    %c0_i32_1 = arith.constant 0 : i32
    return %arg0, %c0_i32, %c0_i32_0 : i32, i32, i32
  }
}

</mosaic_0001>

<llo_original>
// kernel: tpu_custom_call.1
$region0: #{tpu_custom_call.1}
  #allocation0 [shape = 'u32[]', space=smem, size = 0x4, offset = 0x4, fixed_abs, tag = 'smem constant byte address 0x4 - core index']
  #allocation1 [shape = 'u32[72,128]{1,0:T(1,128)}', space=vmem, size = 0x9000, scoped, tag = 'internal scratch']
  #allocation2 [shape = 'f32[8,128]{1,0:T(8,128)}', space=vmem, size = 0x1000, scoped, tag = 'scratch operand']
  #allocation3 [shape = 'f32[1,1]{1,0:T(1,128)S(1)}', space=vmem, size = 0x200, scoped, tag = 'scoped memory for tpu_custom_call.1']
  %s0 = inlined_call_operand.hbm [shape: bf16[8,32], index: 0, kind: input, shape index: {}]
  %s1 = inlined_call_operand.hbm [shape: bf16[8,16], index: 1, kind: input, shape index: {}]
  %s2 = inlined_call_operand.hbm [shape: bf16[32,128], index: 2, kind: input, shape index: {}]
  %s3 = inlined_call_operand.vmem [shape: bf16[16,128], index: 3, kind: input, shape index: {}]
  %s4 = inlined_call_operand.vmem [shape: f32[4,128], index: 4, kind: input, shape index: {}]
  %s5 = inlined_call_operand.hbm [shape: bf16[1,128,128], index: 5, kind: input, shape index: {}]
  %s6 = inlined_call_operand.vmem [shape: f32[1,3,128], index: 6, kind: input, shape index: {}]
  %s7 = inlined_call_operand.<no memory space> [shape: f32[1,1], index: 7, kind: input, shape index: {}]
  %s8 = inlined_call_operand.hbm [shape: f32[1,1,8], index: 8, kind: output, shape index: {}]
  %s9 = sld [smem:[#allocation0]]
  $region97: #{tpu_custom_call.1} parent=0
    _
  %s11 = ssub.s32 1, %s9
  %s12 = scalar_select 0, %s11, %s9
  %v13 = vstv %s7
  %14 = vst [vmem:[#allocation3] sm:$0x1] %v13
  $region1: #{tpu_custom_call.1} parent=0
    #allocation4 [shape = 'u8[4096]{0}', space=vmem, size = 0x1000, scoped, tag = 'input window, operand 0']
    #allocation5 [shape = 's32[2]{0}', space=sflag, size = 0x8, scoped, tag = 'scoped memory for tpu_custom_call.1']
    #allocation6 [shape = 's32[2]{0}', space=sflag, size = 0x8, scoped, tag = 'scoped memory for tpu_custom_call.1']
    #allocation7 [shape = 'u8[4096]{0}', space=vmem, size = 0x1000, scoped, tag = 'input window, operand 1']
    #allocation8 [shape = 's32[2]{0}', space=sflag, size = 0x8, scoped, tag = 'scoped memory for tpu_custom_call.1']
    #allocation9 [shape = 'u8[16384]{0}', space=vmem, size = 0x4000, scoped, tag = 'input window, operand 2']
    #allocation10 [shape = 'u8[32768]{0}', space=vmem, size = 0x8000, scoped, tag = 'input window, operand 5, single buffered']
    #allocation11 [shape = 's32[1]{0}', space=sflag, size = 0x4, scoped, tag = 'scoped memory for tpu_custom_call.1']
    #allocation12 [shape = 'u8[512]{0}', space=vmem, size = 0x400, scoped, tag = 'output window, operand 0, single buffered']
    %15 = vsyncpa [#allocation5], 0
    %s16 = scalar_lea.sflag [#allocation5], 1
    %17 = vsyncpa %s16, 0
    %18 = vsyncpa [#allocation8], 0
    %s19 = scalar_lea.sflag [#allocation8], 1
    %20 = vsyncpa %s19, 0
    %21 = vsyncpa [#allocation11], 0
    %22 = vsyncpa [#allocation6], 0
    loop: start=0, step=1, limit=4
    $region2: #{tpu_custom_call.1} parent=1 // loop_pre_header
      _
    $region3: #{tpu_custom_call.1} parent=1 // loop_header
      %s24 = sphi 0, %s28
      %p25 = scmp.ge.s32.totalorder %s24, 4
      %s31 = sphi 0, %s43
      %s32 = sphi 0, %s39
      %s33 = sphi 0, %s31
      %s34 = sphi 0, %s32
      %s35 = sphi 0, %s33
      %s36 = sphi 0, %s34
      %s52 = sphi 0, %s54
      %s55 = sphi 0, %s52
      %s56 = sphi 0, %s55
      %s72 = sphi 0, %s56
      %s86 = sphi 0, %s88
      %s89 = sphi 0, %s86
      %s90 = sphi 0, %s89
      %s106 = sphi 0, %s90
      %s116 = sphi 0, %s118
      %s119 = sphi 0, %s116
      %s120 = sphi 0, %s119
      %s136 = sphi 0, %s120
      %s148 = sphi 0, %s150
      %s151 = sphi 0, %s148
      %s152 = sphi 0, %s151
      %s168 = sphi 0, %s152
      %s172 = sphi 0, %s172
      %s174 = sphi 0, %s172
      %s175 = sphi 0, %s174
      %s189 = sphi 0, %s175
      %s193 = sphi 0, %s193
      %s195 = sphi 0, %s193
      %s196 = sphi 0, %s195
      %s210 = sphi 0, %s196
      %s214 = sphi 0, %s214
      %s216 = sphi 0, %s214
      %s217 = sphi 0, %s216
      %s231 = sphi 0, %s217
      %s235 = sphi 0, %s235
      %s237 = sphi 0, %s235
      %s238 = sphi 0, %s237
      %s252 = sphi 0, %s238
      %s258 = sphi 0, %s260
      %s261 = sphi 0, %s258
      %s262 = sphi 0, %s261
      %s278 = sphi 0, %s262
    $region4: #{tpu_custom_call.1} parent=1 // loop_header_branch
      %27 = sbr.rel (%p25) target = $region8
    $region5: #{tpu_custom_call.1} parent=1 // loop_body
      %s29 = ssub.s32 %s24, 1
      %s30 = ssub.s32 %s24, 2
      %s37 = sadd.s32 1, %s32
      %p38 = scmp.ge.s32.totalorder %s37, 2
      %s39 = scalar_select %p38, 0, %s37
      %s40 = sadd.s32 1, %s31
      %s41 = scalar_select %p38, %s40, %s31
      %p42 = scmp.ge.s32.totalorder %s41, 1
      %s43 = scalar_select %p42, 0, %s41
      %p44 = scmp.lt.s32.totalorder %s32, 0
      %s45 = scalar_select %p44, %s32, 0
      %p46 = scmp.lt.s32.totalorder %s39, 0
      %s47 = scalar_select %p46, %s39, 0
      %s48 = ssub.s32 %s31, %s43
      %s49 = ssub.s32 %s45, %s47
      %s50 = sor.u32 %s48, %s49
      %p51 = scmp.eq.s32.totalorder %s50, 0
      %s53 = sadd.s32 %s52, 1
      %s54 = scalar_select %p51, %s52, %s53
      %p57 = pneg %p51
      %p58 = scmp.eq.s32.totalorder %s24, 1
      %p59 = por %p57, %p58
      %p60 = scmp.ne.s32.totalorder %s52, %s55
      %p61 = scmp.eq.s32.totalorder %s24, 0
      %p62 = por %p60, %p61
      %p63 = scmp.ne.s32.totalorder %s52, %s55
      %p64 = scmp.eq.s32.totalorder %s29, 1
      %p65 = por %p63, %p64
      %p66 = scmp.ne.s32.totalorder %s55, %s56
      %p67 = scmp.eq.s32.totalorder %s29, 0
      %p68 = por %p66, %p67
      %p69 = scmp.ne.s32.totalorder %s55, %s56
      %p70 = scmp.eq.s32.totalorder %s30, 1
      %p71 = por %p69, %p70
      %p73 = scmp.ne.s32.totalorder %s56, %s72
      %p74 = scmp.eq.s32.totalorder %s30, 0
      %p75 = por %p73, %p74
      %s76 = ssub.s32 %s32, 1
      %p77 = scmp.gt.s32.totalorder %s76, 0
      %s78 = scalar_select %p77, %s76, 0
      %s79 = ssub.s32 %s39, 1
      %p80 = scmp.gt.s32.totalorder %s79, 0
      %s81 = scalar_select %p80, %s79, 0
      %s82 = ssub.s32 %s31, %s43
      %s83 = ssub.s32 %s78, %s81
      %s84 = sor.u32 %s82, %s83
      %p85 = scmp.eq.s32.totalorder %s84, 0
      %s87 = sadd.s32 %s86, 1
      %s88 = scalar_select %p85, %s86, %s87
      %p91 = pneg %p85
      %p92 = scmp.eq.s32.totalorder %s24, 1
      %p93 = por %p91, %p92
      %p94 = scmp.ne.s32.totalorder %s86, %s89
      %p95 = scmp.eq.s32.totalorder %s24, 0
      %p96 = por %p94, %p95
      %p97 = scmp.ne.s32.totalorder %s86, %s89
      %p98 = scmp.eq.s32.totalorder %s29, 1
      %p99 = por %p97, %p98
      %p100 = scmp.ne.s32.totalorder %s89, %s90
      %p101 = scmp.eq.s32.totalorder %s29, 0
      %p102 = por %p100, %p101
      %p103 = scmp.ne.s32.totalorder %s89, %s90
      %p104 = scmp.eq.s32.totalorder %s30, 1
      %p105 = por %p103, %p104
      %p107 = scmp.ne.s32.totalorder %s90, %s106
      %p108 = scmp.eq.s32.totalorder %s30, 0
      %p109 = por %p107, %p108
      %p110 = scmp.lt.s32.totalorder %s32, 0
      %s111 = scalar_select %p110, %s32, 0
      %p112 = scmp.lt.s32.totalorder %s39, 0
      %s113 = scalar_select %p112, %s39, 0
      %s114 = ssub.s32 %s111, %s113
      %p115 = scmp.eq.s32.totalorder %s114, 0
      %s117 = sadd.s32 %s116, 1
      %s118 = scalar_select %p115, %s116, %s117
      %p121 = pneg %p115
      %p122 = scmp.eq.s32.totalorder %s24, 1
      %p123 = por %p121, %p122
      %p124 = scmp.ne.s32.totalorder %s116, %s119
      %p125 = scmp.eq.s32.totalorder %s24, 0
      %p126 = por %p124, %p125
      %p127 = scmp.ne.s32.totalorder %s116, %s119
      %p128 = scmp.eq.s32.totalorder %s29, 1
      %p129 = por %p127, %p128
      %p130 = scmp.ne.s32.totalorder %s119, %s120
      %p131 = scmp.eq.s32.totalorder %s29, 0
      %p132 = por %p130, %p131
      %p133 = scmp.ne.s32.totalorder %s119, %s120
      %p134 = scmp.eq.s32.totalorder %s30, 1
      %p135 = por %p133, %p134
      %p137 = scmp.ne.s32.totalorder %s120, %s136
      %p138 = scmp.eq.s32.totalorder %s30, 0
      %p139 = por %p137, %p138
      %s140 = ssub.s32 %s32, 1
      %p141 = scmp.gt.s32.totalorder %s140, 0
      %s142 = scalar_select %p141, %s140, 0
      %s143 = ssub.s32 %s39, 1
      %p144 = scmp.gt.s32.totalorder %s143, 0
      %s145 = scalar_select %p144, %s143, 0
      %s146 = ssub.s32 %s142, %s145
      %p147 = scmp.eq.s32.totalorder %s146, 0
      %s149 = sadd.s32 %s148, 1
      %s150 = scalar_select %p147, %s148, %s149
      %p153 = pneg %p147
      %p154 = scmp.eq.s32.totalorder %s24, 1
      %p155 = por %p153, %p154
      %p156 = scmp.ne.s32.totalorder %s148, %s151
      %p157 = scmp.eq.s32.totalorder %s24, 0
      %p158 = por %p156, %p157
      %p159 = scmp.ne.s32.totalorder %s148, %s151
      %p160 = scmp.eq.s32.totalorder %s29, 1
      %p161 = por %p159, %p160
      %p162 = scmp.ne.s32.totalorder %s151, %s152
      %p163 = scmp.eq.s32.totalorder %s29, 0
      %p164 = por %p162, %p163
      %p165 = scmp.ne.s32.totalorder %s151, %s152
      %p166 = scmp.eq.s32.totalorder %s30, 1
      %p167 = por %p165, %p166
      %p169 = scmp.ne.s32.totalorder %s152, %s168
      %p170 = scmp.eq.s32.totalorder %s30, 0
      %p171 = por %p169, %p170
      %s173 = sadd.s32 %s172, 1
      %p176 = scmp.eq.s32.totalorder %s24, 1
      %p177 = scmp.ne.s32.totalorder %s172, %s174
      %p178 = scmp.eq.s32.totalorder %s24, 0
      %p179 = por %p177, %p178
      %p180 = scmp.ne.s32.totalorder %s172, %s174
      %p181 = scmp.eq.s32.totalorder %s29, 1
      %p182 = por %p180, %p181
      %p183 = scmp.ne.s32.totalorder %s174, %s175
      %p184 = scmp.eq.s32.totalorder %s29, 0
      %p185 = por %p183, %p184
      %p186 = scmp.ne.s32.totalorder %s174, %s175
      %p187 = scmp.eq.s32.totalorder %s30, 1
      %p188 = por %p186, %p187
      %p190 = scmp.ne.s32.totalorder %s175, %s189
      %p191 = scmp.eq.s32.totalorder %s30, 0
      %p192 = por %p190, %p191
      %s194 = sadd.s32 %s193, 1
      %p197 = scmp.eq.s32.totalorder %s24, 1
      %p198 = scmp.ne.s32.totalorder %s193, %s195
      %p199 = scmp.eq.s32.totalorder %s24, 0
      %p200 = por %p198, %p199
      %p201 = scmp.ne.s32.totalorder %s193, %s195
      %p202 = scmp.eq.s32.totalorder %s29, 1
      %p203 = por %p201, %p202
      %p204 = scmp.ne.s32.totalorder %s195, %s196
      %p205 = scmp.eq.s32.totalorder %s29, 0
      %p206 = por %p204, %p205
      %p207 = scmp.ne.s32.totalorder %s195, %s196
      %p208 = scmp.eq.s32.totalorder %s30, 1
      %p209 = por %p207, %p208
      %p211 = scmp.ne.s32.totalorder %s196, %s210
      %p212 = scmp.eq.s32.totalorder %s30, 0
      %p213 = por %p211, %p212
      %s215 = sadd.s32 %s214, 1
      %p218 = scmp.eq.s32.totalorder %s24, 1
      %p219 = scmp.ne.s32.totalorder %s214, %s216
      %p220 = scmp.eq.s32.totalorder %s24, 0
      %p221 = por %p219, %p220
      %p222 = scmp.ne.s32.totalorder %s214, %s216
      %p223 = scmp.eq.s32.totalorder %s29, 1
      %p224 = por %p222, %p223
      %p225 = scmp.ne.s32.totalorder %s216, %s217
      %p226 = scmp.eq.s32.totalorder %s29, 0
      %p227 = por %p225, %p226
      %p228 = scmp.ne.s32.totalorder %s216, %s217
      %p229 = scmp.eq.s32.totalorder %s30, 1
      %p230 = por %p228, %p229
      %p232 = scmp.ne.s32.totalorder %s217, %s231
      %p233 = scmp.eq.s32.totalorder %s30, 0
      %p234 = por %p232, %p233
      %s236 = sadd.s32 %s235, 1
      %p239 = scmp.eq.s32.totalorder %s24, 1
      %p240 = scmp.ne.s32.totalorder %s235, %s237
      %p241 = scmp.eq.s32.totalorder %s24, 0
      %p242 = por %p240, %p241
      %p243 = scmp.ne.s32.totalorder %s235, %s237
      %p244 = scmp.eq.s32.totalorder %s29, 1
      %p245 = por %p243, %p244
      %p246 = scmp.ne.s32.totalorder %s237, %s238
      %p247 = scmp.eq.s32.totalorder %s29, 0
      %p248 = por %p246, %p247
      %p249 = scmp.ne.s32.totalorder %s237, %s238
      %p250 = scmp.eq.s32.totalorder %s30, 1
      %p251 = por %p249, %p250
      %p253 = scmp.ne.s32.totalorder %s238, %s252
      %p254 = scmp.eq.s32.totalorder %s30, 0
      %p255 = por %p253, %p254
      %s256 = ssub.s32 %s31, %s43
      %p257 = scmp.eq.s32.totalorder %s256, 0
      %s259 = sadd.s32 %s258, 1
      %s260 = scalar_select %p257, %s258, %s259
      %p263 = pneg %p257
      %p264 = scmp.eq.s32.totalorder %s24, 1
      %p265 = por %p263, %p264
      %p266 = scmp.ne.s32.totalorder %s258, %s261
      %p267 = scmp.eq.s32.totalorder %s24, 0
      %p268 = por %p266, %p267
      %p269 = scmp.ne.s32.totalorder %s258, %s261
      %p270 = scmp.eq.s32.totalorder %s29, 1
      %p271 = por %p269, %p270
      %p272 = scmp.ne.s32.totalorder %s261, %s262
      %p273 = scmp.eq.s32.totalorder %s29, 0
      %p274 = por %p272, %p273
      %p275 = scmp.ne.s32.totalorder %s261, %s262
      %p276 = scmp.eq.s32.totalorder %s30, 1
      %p277 = por %p275, %p276
      %p279 = scmp.ne.s32.totalorder %s262, %s278
      %p280 = scmp.eq.s32.totalorder %s30, 0
      %p281 = por %p279, %p280
      %p282 = scmp.le.s32.totalorder 1, %s24
      %p283 = scmp.lt.s32.totalorder %s24, 3
      %p284 = pnand %p282, %p283
      %p285 = pneg %p284
      // Predicated region
      $region9: #{tpu_custom_call.1} parent=5 // pred_check
        _
      $region10: #{tpu_custom_call.1} parent=5 // pred_check_branch
        %287 = sbr.rel (%p284) target = $region12
      $region11: #{tpu_custom_call.1} parent=5 // pred_region
        %s288 = ssub.s32 %s24, 1
        // Predicated region
        $region13: #{tpu_custom_call.1} parent=11 // pred_check
          %p289 = pneg %p185
        $region14: #{tpu_custom_call.1} parent=11 // pred_check_branch
          %291 = sbr.rel (%p289) target = $region16
        $region15: #{tpu_custom_call.1} parent=11 // pred_region
          _
        $region16: #{tpu_custom_call.1} parent=11 // pred_fallthru
          _
        // Predicated region
        $region17: #{tpu_custom_call.1} parent=11 // pred_check
          %p292 = pneg %p206
        $region18: #{tpu_custom_call.1} parent=11 // pred_check_branch
          %294 = sbr.rel (%p292) target = $region20
        $region19: #{tpu_custom_call.1} parent=11 // pred_region
          %296 = vsyncadd [#allocation11], 0
          %s297 = sshll.u32 %s5, 4
          %s298 = int_to_ptr.hbm [resolvable:$true] %s297
          %s299 = sshll.u32 [#allocation10], 4
          %s300 = int_to_ptr.vmem [resolvable:$true] %s299
          %305 = dma.hbm_to_vmem [thread:$0]  %s298, 1024, %s300, [#allocation11], 64, 64, 4
        $region20: #{tpu_custom_call.1} parent=11 // pred_fallthru
          _
        // Predicated region
        $region21: #{tpu_custom_call.1} parent=11 // pred_check
          %p306 = pneg %p227
        $region22: #{tpu_custom_call.1} parent=11 // pred_check_branch
          %308 = sbr.rel (%p306) target = $region24
        $region23: #{tpu_custom_call.1} parent=11 // pred_region
          _
        $region24: #{tpu_custom_call.1} parent=11 // pred_fallthru
          _
        // Predicated region
        $region25: #{tpu_custom_call.1} parent=11 // pred_check
          %p309 = pneg %p248
        $region26: #{tpu_custom_call.1} parent=11 // pred_check_branch
          %311 = sbr.rel (%p309) target = $region28
        $region27: #{tpu_custom_call.1} parent=11 // pred_region
          _
        $region28: #{tpu_custom_call.1} parent=11 // pred_fallthru
          _
      $region12: #{tpu_custom_call.1} parent=5 // pred_fallthru
        _
      %p312 = scmp.lt.s32.totalorder %s24, 2
      // Predicated region
      $region29: #{tpu_custom_call.1} parent=5 // pred_check
        %p313 = pneg %p312
      $region30: #{tpu_custom_call.1} parent=5 // pred_check_branch
        %315 = sbr.rel (%p313) target = $region32
      $region31: #{tpu_custom_call.1} parent=5 // pred_region
        // Predicated region
        $region33: #{tpu_custom_call.1} parent=31 // pred_check
          %p316 = pneg %p62
        $region34: #{tpu_custom_call.1} parent=31 // pred_check_branch
          %318 = sbr.rel (%p316) target = $region36
        $region35: #{tpu_custom_call.1} parent=31 // pred_region
          %s319 = sand.u32 %s52, 1
          %s320 = scalar_lea.sflag [#allocation5], %s319
          %s321 = sand.u32 %s52, 1
          %s322 = smul.addr %s321, 4
          %s323 = scalar_lea.vmem [#allocation4], %s322
          %p324 = scmp.lt.s32.totalorder %s32, 0
          %s325 = scalar_select %p324, %s32, 0
          %327 = vsyncadd %s320, 0
          %s328 = sadd.s32 %s325, %s31
          %s329 = smul.addr %s328, 4
          %s330 = scalar_lea.hbm %s0, %s329
          %s332 = sshll.u32 %s330, 4
          %s333 = int_to_ptr.hbm [resolvable:$true] %s332
          %s334 = sshll.u32 %s323, 4
          %s335 = int_to_ptr.vmem [resolvable:$true] %s334
          %337 = dma.hbm_to_vmem [thread:$0]  %s333, 64, %s335, %s320
        $region36: #{tpu_custom_call.1} parent=31 // pred_fallthru
          _
        // Predicated region
        $region37: #{tpu_custom_call.1} parent=31 // pred_check
          %p338 = pneg %p96
        $region38: #{tpu_custom_call.1} parent=31 // pred_check_branch
          %340 = sbr.rel (%p338) target = $region40
        $region39: #{tpu_custom_call.1} parent=31 // pred_region
          %s341 = sand.u32 %s24, 1
          %s342 = scalar_lea.sflag [#allocation8], %s341
          %s343 = sand.u32 %s86, 1
          %s344 = smul.addr %s343, 4
          %s345 = scalar_lea.vmem [#allocation7], %s344
          %s346 = ssub.s32 %s32, 1
          %p347 = scmp.gt.s32.totalorder %s346, 0
          %s348 = scalar_select %p347, %s346, 0
          %350 = vsyncadd %s342, 0
          %s351 = sadd.s32 %s348, %s31
          %s352 = smul.addr %s351, 4
          %s353 = scalar_lea.hbm %s1, %s352
          %s355 = sshll.u32 %s353, 4
          %s356 = int_to_ptr.hbm [resolvable:$true] %s355
          %s357 = sshll.u32 %s345, 4
          %s358 = int_to_ptr.vmem [resolvable:$true] %s357
          %360 = dma.hbm_to_vmem [thread:$0]  %s356, 64, %s358, %s342
        $region40: #{tpu_custom_call.1} parent=31 // pred_fallthru
          _
        // Predicated region
        $region41: #{tpu_custom_call.1} parent=31 // pred_check
          %p361 = pneg %p126
        $region42: #{tpu_custom_call.1} parent=31 // pred_check_branch
          %363 = sbr.rel (%p361) target = $region44
        $region43: #{tpu_custom_call.1} parent=31 // pred_region
          %s364 = sand.u32 %s24, 1
          %s365 = scalar_lea.sflag [#allocation8], %s364
          %s366 = sand.u32 %s116, 1
          %s367 = smul.addr %s366, 16
          %s368 = scalar_lea.vmem [#allocation9], %s367
          %p369 = scmp.lt.s32.totalorder %s32, 0
          %s370 = scalar_select %p369, %s32, 0
          %s371 = smul.u32 4, %s370
          %373 = vsyncadd %s365, 0
          %s374 = smul.addr %s371, 4
          %s375 = scalar_lea.hbm %s2, %s374
          %s376 = sshll.u32 %s375, 4
          %s377 = int_to_ptr.hbm [resolvable:$true] %s376
          %s378 = sshll.u32 %s368, 4
          %s379 = int_to_ptr.vmem [resolvable:$true] %s378
          %384 = dma.hbm_to_vmem [thread:$0]  %s377, 256, %s379, %s365, 64, 64, 4
        $region44: #{tpu_custom_call.1} parent=31 // pred_fallthru
          _
        // Predicated region
        $region45: #{tpu_custom_call.1} parent=31 // pred_check
          %p385 = pneg %p158
        $region46: #{tpu_custom_call.1} parent=31 // pred_check_branch
          %387 = sbr.rel (%p385) target = $region48
        $region47: #{tpu_custom_call.1} parent=31 // pred_region
          %s388 = ssub.s32 %s32, 1
          %p389 = scmp.gt.s32.totalorder %s388, 0
          %s390 = scalar_select %p389, %s388, 0
          %s391 = smul.u32 2, %s390
          %p392 = scmp.lt.s32.totalorder %s391, 1
          %s393 = scalar_select %p392, %s391, 1
          %s394 = smul.addr %s393, 4
          %s395 = scalar_lea.vmem %s3, %s394
          %s396 = ssub.s32 %s32, 1
          %p397 = scmp.gt.s32.totalorder %s396, 0
          %s398 = scalar_select %p397, %s396, 0
          %s399 = smul.u32 2, %s398
        $region48: #{tpu_custom_call.1} parent=31 // pred_fallthru
          _
      $region32: #{tpu_custom_call.1} parent=5 // pred_fallthru
        _
      %p400 = scmp.le.s32.totalorder 1, %s24
      %p401 = scmp.lt.s32.totalorder %s24, 3
      %p402 = pnand %p400, %p401
      %p403 = pneg %p402
      // Predicated region
      $region49: #{tpu_custom_call.1} parent=5 // pred_check
        _
      $region50: #{tpu_custom_call.1} parent=5 // pred_check_branch
        %405 = sbr.rel (%p402) target = $region52
      $region51: #{tpu_custom_call.1} parent=5 // pred_region
        %s406 = ssub.s32 %s24, 1
        %s407 = sand.u32 %s55, 1
        %s408 = scalar_lea.sflag [#allocation5], %s407
        %s409 = sand.u32 %s55, 1
        %s410 = smul.addr %s409, 4
        %s411 = scalar_lea.vmem [#allocation4], %s410
        // Predicated region
        $region53: #{tpu_custom_call.1} parent=51 // pred_check
          %p412 = pneg %p68
        $region54: #{tpu_custom_call.1} parent=51 // pred_check_branch
          %414 = sbr.rel (%p412) target = $region56
        $region55: #{tpu_custom_call.1} parent=51 // pred_region
          %416 = dma.done %s408, 64
        $region56: #{tpu_custom_call.1} parent=51 // pred_fallthru
          _
        %s417 = sand.u32 %s29, 1
        %s418 = scalar_lea.sflag [#allocation8], %s417
        %s419 = sand.u32 %s89, 1
        %s420 = smul.addr %s419, 4
        %s421 = scalar_lea.vmem [#allocation7], %s420
        // Predicated region
        $region57: #{tpu_custom_call.1} parent=51 // pred_check
          %p422 = pneg %p102
        $region58: #{tpu_custom_call.1} parent=51 // pred_check_branch
          %424 = sbr.rel (%p422) target = $region60
        $region59: #{tpu_custom_call.1} parent=51 // pred_region
          %426 = dma.done %s418, 64
        $region60: #{tpu_custom_call.1} parent=51 // pred_fallthru
          _
        %s427 = sand.u32 %s29, 1
        %s428 = scalar_lea.sflag [#allocation8], %s427
        %s429 = sand.u32 %s119, 1
        %s430 = smul.addr %s429, 16
        %s431 = scalar_lea.vmem [#allocation9], %s430
        // Predicated region
        $region61: #{tpu_custom_call.1} parent=51 // pred_check
          %p432 = pneg %p132
        $region62: #{tpu_custom_call.1} parent=51 // pred_check_branch
          %434 = sbr.rel (%p432) target = $region64
        $region63: #{tpu_custom_call.1} parent=51 // pred_region
          %436 = dma.done %s428, 256
        $region64: #{tpu_custom_call.1} parent=51 // pred_fallthru
          _
        // Predicated region
        $region65: #{tpu_custom_call.1} parent=51 // pred_check
          %p437 = pneg %p206
        $region66: #{tpu_custom_call.1} parent=51 // pred_check_branch
          %439 = sbr.rel (%p437) target = $region68
        $region67: #{tpu_custom_call.1} parent=51 // pred_region
          %441 = dma.done [#allocation11], 1024
        $region68: #{tpu_custom_call.1} parent=51 // pred_fallthru
          _
        %s442 = sand.u32 %s55, 1
        %s443 = scalar_lea.sflag [#allocation5], %s442
        %s444 = sand.u32 %s55, 1
        %s445 = smul.addr %s444, 4
        %s446 = scalar_lea.vmem [#allocation4], %s445
        %p447 = pneg %p68
        %p448 = pneg %p65
        %s449 = sand.u32 %s29, 1
        %s450 = scalar_lea.sflag [#allocation8], %s449
        %s451 = sand.u32 %s89, 1
        %s452 = smul.addr %s451, 4
        %s453 = scalar_lea.vmem [#allocation7], %s452
        %p454 = pneg %p102
        %p455 = pneg %p99
        %s456 = sand.u32 %s29, 1
        %s457 = scalar_lea.sflag [#allocation8], %s456
        %s458 = sand.u32 %s119, 1
        %s459 = smul.addr %s458, 16
        %s460 = scalar_lea.vmem [#allocation9], %s459
        %p461 = pneg %p132
        %p462 = pneg %p129
        %s463 = ssub.s32 %s34, 1
        %p464 = scmp.gt.s32.totalorder %s463, 0
        %s465 = scalar_select %p464, %s463, 0
        %s466 = smul.u32 2, %s465
        %p467 = scmp.lt.s32.totalorder %s466, 1
        %s468 = scalar_select %p467, %s466, 1
        %s469 = smul.addr %s468, 4
        %s470 = scalar_lea.vmem %s3, %s469
        %p471 = pneg %p164
        %p472 = pneg %p161
        %p473 = pneg %p185
        %p474 = pneg %p182
        %p475 = pneg %p206
        %p476 = pneg %p203
        %p477 = pneg %p227
        %p478 = pneg %p224
        %p479 = pneg %p248
        %p480 = pneg %p245
        %p481 = pneg %p274
        %p482 = pneg %p271
        %p483 = scmp.lt.s32.totalorder %s34, 0
        %s484 = scalar_select %p483, %s34, 0
        %s485 = ssub.s32 %s34, 1
        %p486 = scmp.gt.s32.totalorder %s485, 0
        %s487 = scalar_select %p486, %s485, 0
        %p488 = scmp.lt.s32.totalorder %s34, 0
        %s489 = scalar_select %p488, %s34, 0
        %s490 = smul.u32 4, %s489
        %s491 = ssub.s32 %s34, 1
        %p492 = scmp.gt.s32.totalorder %s491, 0
        %s493 = scalar_select %p492, %s491, 0
        %s494 = smul.u32 2, %s493
        %p495 = scmp.lt.s32.totalorder %s494, 1
        %s496 = scalar_select %p495, %s494, 1
        %s497 = smul.addr %s496, 4
        %s498 = scalar_lea.vmem %s3, %s497
        %s499 = ssub.s32 %s34, 1
        %p500 = scmp.gt.s32.totalorder %s499, 0
        %s501 = scalar_select %p500, %s499, 0
        %s502 = smul.u32 2, %s501
        %p504 = scmp.eq.s32.totalorder %s34, 0
        // Predicated region
        $region69: #{tpu_custom_call.1} parent=51 // pred_check
          %p505 = pneg %p504
        $region70: #{tpu_custom_call.1} parent=51 // pred_check_branch
          %507 = sbr.rel (%p505) target = $region72
        $region71: #{tpu_custom_call.1} parent=51 // pred_region
          %508 = vst [vmem:[#allocation2] sm:$0xff] 0.0
        $region72: #{tpu_custom_call.1} parent=51 // pred_fallthru
          _
        %p509 = scmp.lt.s32.totalorder %s34, 1
        // Predicated region
        $region73: #{tpu_custom_call.1} parent=51 // pred_check
          %p510 = pneg %p509
        $region74: #{tpu_custom_call.1} parent=51 // pred_check_branch
          %512 = sbr.rel (%p510) target = $region76
        $region75: #{tpu_custom_call.1} parent=51 // pred_region
          %v513 = vld [vmem:[#allocation2] sm:$0xff]
          %v514 = vld [vmem:[%s411] sm:$0xf]
          %v515 = vld [vmem:[%s431] sm:$0xf]
          %v516 = vld [vmem:[%s431 + $0x4] sm:$0xf]
          %v517 = vld [vmem:[%s431 + $0x8] sm:$0xf]
          %v518 = vld [vmem:[%s431 + $0xc] sm:$0xf]
          %v523 = vunpack.c.l.b16 %v515
          %v524 = vunpack.c.l.b16 %v516
          %v525 = vunpack.c.l.b16 %v517
          %v526 = vunpack.c.l.b16 %v518
          %v527 = vpack.c.b16 %v524, %v523
          %v528 = vpack.c.b16 %v526, %v525
          %vm531 = vcmask 261120
          %v533 = vsel %vm531, %v514, 0
          %535 = vmatpush.bf16.msra.mxu0 0
          %536 = vmatpush.bf16.msra.mxu0 0
          %537 = vmatpush.bf16.msra.mxu0 0
          %538 = vmatpush.bf16.msra.mxu0 0
          %539 = vmatpush.bf16.msra.mxu0 0
          %540 = vmatpush.bf16.msra.mxu0 0
          %541 = vmatpush.bf16.msra.mxu0 %v528
          %542 = vmatpush.bf16.msra.mxu0 %v527
          %543 = vmatmul.bf16.gmra.mxu0 %v533
          %v544 = vpop.f32.mrf.mxu0
          %v545 = vadd.f32 0.0, %v544
          %v546 = vpop.f32.mrf.mxu0
          %547 = vdwg.mxu0
          %v548 = vadd.f32 %v513, %v545
          %549 = vst [vmem:[#allocation2] sm:$0xff] %v548
        $region76: #{tpu_custom_call.1} parent=51 // pred_fallthru
          _
        %p550 = scmp.ge.s32.totalorder %s34, 1
        // Predicated region
        $region77: #{tpu_custom_call.1} parent=51 // pred_check
          %p551 = pneg %p550
        $region78: #{tpu_custom_call.1} parent=51 // pred_check_branch
          %553 = sbr.rel (%p551) target = $region80
        $region79: #{tpu_custom_call.1} parent=51 // pred_region
          %v554 = vld [vmem:[#allocation2] sm:$0xff]
          %v555 = vld [vmem:[%s421] sm:$0xf]
          %v556 = vld [vmem:[%s498] sm:$0xf]
          %v557 = vld [vmem:[%s498 + $0x4] sm:$0xf]
          %v560 = vunpack.c.l.b16 %v556
          %v561 = vunpack.c.l.b16 %v557
          %v562 = vpack.c.b16 %v561, %v560
          %vm564 = vcmask 130048
          %v566 = vsel %vm564, %v555, 0
          %568 = vmatpush.bf16.msra.mxu0 0
          %569 = vmatpush.bf16.msra.mxu0 0
          %570 = vmatpush.bf16.msra.mxu0 0
          %571 = vmatpush.bf16.msra.mxu0 0
          %572 = vmatpush.bf16.msra.mxu0 0
          %573 = vmatpush.bf16.msra.mxu0 0
          %574 = vmatpush.bf16.msra.mxu0 0
          %575 = vmatpush.bf16.msra.mxu0 %v562
          %576 = vmatmul.bf16.gmra.mxu0 %v566
          %v577 = vpop.f32.mrf.mxu0
          %v578 = vadd.f32 0.0, %v577
          %v579 = vpop.f32.mrf.mxu0
          %580 = vdwg.mxu0
          %v581 = vadd.f32 %v554, %v578
          %582 = vst [vmem:[#allocation2] sm:$0xff] %v581
        $region80: #{tpu_custom_call.1} parent=51 // pred_fallthru
          _
        %p583 = scmp.eq.s32.totalorder %s34, 1
        // Predicated region
        $region81: #{tpu_custom_call.1} parent=51 // pred_check
          %p584 = pneg %p583
        $region82: #{tpu_custom_call.1} parent=51 // pred_check_branch
          %586 = sbr.rel (%p584) target = $region84
        $region83: #{tpu_custom_call.1} parent=51 // pred_region
          %v587 = vld [vmem:[%s4] sm:$0xf]
          %v588 = vld [vmem:[#allocation3] sm:$0x1]
          %v589 = vld [vmem:[#allocation2] sm:$0xff]
          %v590 = vperm.slane %v587, 0
          %v591 = vadd.f32 %v589, %v590
          %592 = vadd.xlane.f32.xlu0 %v591
          %v593 = vpop.xlane.xlu0 %592
          %v594 = vmul.f32 %v593, 0.0078125
          %v595 = vsub.f32 %v591, %v594
          %v596 = vmul.f32 %v595, %v595
          %597 = vadd.xlane.f32.xlu0 %v596
          %v598 = vpop.xlane.xlu0 %597
          %v599 = vmul.f32 %v598, 0.0078125
          %v600 = vadd.f32 %v599, 1e-05
          %v601 = vrsqrt.pop %v600
          %v602 = vmul.f32 %v601, %v600
          %v603 = vmul.f32 %v602, %v601
          %v604 = vmul.f32 0.5, %v603
          %v605 = vsub.f32 1.5, %v604
          %v606 = vmul.f32 %v601, %v605
          %vm607 = vweird.f32 %v600
          %vm608 = vweird.f32 %v601
          %vm609 = vmor %vm607, %vm608
          %v610 = vsel %vm609, %v601, %v606
          %v611 = vmul.f32 %v595, %v610
          %v612 = vperm.slane %v587, 1
          %v613 = vmul.f32 %v611, %v612
          %v614 = vperm.slane %v587, 2
          %v615 = vadd.f32 %v613, %v614
          %v616 = vmax.f32 %v615, 0.0
          %v617 = vld [vmem:[%s6] sm:$0x7]
          %v618 = vpack.c.bf16 %v616, %v616
          %v619 = vld [vmem:[#allocation10] sm:$0xf]
          %v620 = vld [vmem:[#allocation10 + $0x4] sm:$0xf]
          %v621 = vld [vmem:[#allocation10 + $0x8] sm:$0xf]
          %v622 = vld [vmem:[#allocation10 + $0xc] sm:$0xf]
          %v623 = vld [vmem:[#allocation10 + $0x10] sm:$0xf]
          %v624 = vld [vmem:[#allocation10 + $0x14] sm:$0xf]
          %v625 = vld [vmem:[#allocation10 + $0x18] sm:$0xf]
          %v626 = vld [vmem:[#allocation10 + $0x1c] sm:$0xf]
          %v627 = vld [vmem:[#allocation10 + $0x20] sm:$0xf]
          %v628 = vld [vmem:[#allocation10 + $0x24] sm:$0xf]
          %v629 = vld [vmem:[#allocation10 + $0x28] sm:$0xf]
          %v630 = vld [vmem:[#allocation10 + $0x2c] sm:$0xf]
          %v631 = vld [vmem:[#allocation10 + $0x30] sm:$0xf]
          %v632 = vld [vmem:[#allocation10 + $0x34] sm:$0xf]
          %v633 = vld [vmem:[#allocation10 + $0x38] sm:$0xf]
          %v634 = vld [vmem:[#allocation10 + $0x3c] sm:$0xf]
          %v635 = vperm.slane %v617, 0
          %v652 = vunpack.c.l.b16 %v619
          %v653 = vunpack.c.l.b16 %v620
          %v654 = vunpack.c.l.b16 %v621
          %v655 = vunpack.c.l.b16 %v622
          %v656 = vunpack.c.l.b16 %v623
          %v657 = vunpack.c.l.b16 %v624
          %v658 = vunpack.c.l.b16 %v625
          %v659 = vunpack.c.l.b16 %v626
          %v660 = vunpack.c.l.b16 %v627
          %v661 = vunpack.c.l.b16 %v628
          %v662 = vunpack.c.l.b16 %v629
          %v663 = vunpack.c.l.b16 %v630
          %v664 = vunpack.c.l.b16 %v631
          %v665 = vunpack.c.l.b16 %v632
          %v666 = vunpack.c.l.b16 %v633
          %v667 = vunpack.c.l.b16 %v634
          %v668 = vpack.c.b16 %v653, %v652
          %v669 = vpack.c.b16 %v655, %v654
          %v670 = vpack.c.b16 %v657, %v656
          %v671 = vpack.c.b16 %v659, %v658
          %v672 = vpack.c.b16 %v661, %v660
          %v673 = vpack.c.b16 %v663, %v662
          %v674 = vpack.c.b16 %v665, %v664
          %v675 = vpack.c.b16 %v667, %v666
          %684 = vmatpush.bf16.msra.mxu0 %v675
          %685 = vmatpush.bf16.msra.mxu0 %v674
          %686 = vmatpush.bf16.msra.mxu0 %v673
          %687 = vmatpush.bf16.msra.mxu0 %v672
          %688 = vmatpush.bf16.msra.mxu0 %v671
          %689 = vmatpush.bf16.msra.mxu0 %v670
          %690 = vmatpush.bf16.msra.mxu0 %v669
          %691 = vmatpush.bf16.msra.mxu0 %v668
          %692 = vmatmul.bf16.gmra.mxu0 %v618
          %v693 = vpop.f32.mrf.mxu0
          %v694 = vadd.f32 %v635, %v693
          %v695 = vpop.f32.mrf.mxu0
          %696 = vdwg.mxu0
          %697 = vadd.xlane.f32.xlu0 %v694
          %v698 = vpop.xlane.xlu0 %697
          %v699 = vmul.f32 %v698, 0.0078125
          %v700 = vsub.f32 %v694, %v699
          %v701 = vmul.f32 %v700, %v700
          %702 = vadd.xlane.f32.xlu0 %v701
          %v703 = vpop.xlane.xlu0 %702
          %v704 = vmul.f32 %v703, 0.0078125
          %v705 = vadd.f32 %v704, 1e-05
          %v706 = vrsqrt.pop %v705
          %v707 = vmul.f32 %v706, %v705
          %v708 = vmul.f32 %v707, %v706
          %v709 = vmul.f32 0.5, %v708
          %v710 = vsub.f32 1.5, %v709
          %v711 = vmul.f32 %v706, %v710
          %vm712 = vweird.f32 %v705
          %vm713 = vweird.f32 %v706
          %vm714 = vmor %vm712, %vm713
          %v715 = vsel %vm714, %v706, %v711
          %v716 = vmul.f32 %v700, %v715
          %v717 = vperm.slane %v617, 1
          %v718 = vmul.f32 %v716, %v717
          %v719 = vperm.slane %v617, 2
          %v720 = vadd.f32 %v718, %v719
          %v721 = vmax.f32 %v720, 0.0
          %723 = vset.pattern.permute.xlu0 0
          %724 = vperm.xlu0 %723, %v588
          %v725 = vpop.permute.xlu0 %724
          %v727 = vperm.slane %v725, 0
          %v729 = vrot.slane %v587, 3
          %731 = vmatpush.xpose.msra.mxu0 0.0
          %732 = vmatpush.xpose.msra.mxu0 0.0
          %733 = vmatpush.xpose.msra.mxu0 0.0
          %734 = vmatpush.xpose.msra.mxu0 0.0
          %735 = vmatpush.xpose.msra.mxu0 0.0
          %736 = vmatpush.xpose.msra.mxu0 0.0
          %737 = vmatpush.xpose.msra.mxu0 0.0
          %738 = vmatpush.xpose.msra.mxu0 0.0
          %739 = vmatpush.xpose.msra.mxu0 0.0
          %740 = vmatpush.xpose.msra.mxu0 0.0
          %741 = vmatpush.xpose.msra.mxu0 0.0
          %742 = vmatpush.xpose.msra.mxu0 0.0
          %743 = vmatpush.xpose.msra.mxu0 0.0
          %744 = vmatpush.xpose.msra.mxu0 0.0
          %745 = vmatpush.xpose.msra.mxu0 0.0
          %746 = vmatpush.xpose.msra.mxu0 %v721
          %747 = vmatmul.f32.gmra.mxu0 %v729
          %v748 = vpop.f32.mrf.mxu0
          %v749 = vadd.f32 %v727, %v748
          %750 = vdwg.mxu0
          %vm751 = vcmask 57344
          %752 = vst.msk [vmem:[#allocation12] sm:$0x1] %vm751, %v749
        $region84: #{tpu_custom_call.1} parent=51 // pred_fallthru
          _
        // Predicated region
        $region85: #{tpu_custom_call.1} parent=51 // pred_check
          %p753 = pneg %p271
        $region86: #{tpu_custom_call.1} parent=51 // pred_check_branch
          %755 = sbr.rel (%p753) target = $region88
        $region87: #{tpu_custom_call.1} parent=51 // pred_region
          %757 = vsyncadd [#allocation6], 0
          %s758 = scalar_lea.hbm %s8, %s33
          %s760 = sshll.u32 [#allocation12], 4
          %s761 = int_to_ptr.vmem [resolvable:$true] %s760
          %s762 = sshll.u32 %s758, 4
          %s763 = int_to_ptr.hbm [resolvable:$true] %s762
          %765 = dma.vmem_to_hbm [thread:$0]  %s761, 16, %s763, [#allocation6]
        $region88: #{tpu_custom_call.1} parent=51 // pred_fallthru
          _
        // Predicated region
        $region89: #{tpu_custom_call.1} parent=51 // pred_check
          %p766 = pneg %p271
        $region90: #{tpu_custom_call.1} parent=51 // pred_check_branch
          %768 = sbr.rel (%p766) target = $region92
        $region91: #{tpu_custom_call.1} parent=51 // pred_region
          %770 = dma.done [#allocation6], 16
        $region92: #{tpu_custom_call.1} parent=51 // pred_fallthru
          _
      $region52: #{tpu_custom_call.1} parent=5 // pred_fallthru
        _
      %p771 = scmp.le.s32.totalorder 2, %s24
      // Predicated region
      $region93: #{tpu_custom_call.1} parent=5 // pred_check
        %p772 = pneg %p771
      $region94: #{tpu_custom_call.1} parent=5 // pred_check_branch
        %774 = sbr.rel (%p772) target = $region96
      $region95: #{tpu_custom_call.1} parent=5 // pred_region
        %s775 = ssub.s32 %s24, 2
      $region96: #{tpu_custom_call.1} parent=5 // pred_fallthru
        _
    $region6: #{tpu_custom_call.1} parent=1 // loop_footer
      %s28 = sadd.s32 1, %s24
    $region7: #{tpu_custom_call.1} parent=1 // loop_footer_branch
      %23 = sbr.rel target = $region3
    $region8: #{tpu_custom_call.1} parent=1 // loop_exit
      _
    %776 = vsyncpa [#allocation5], 1
    %s777 = scalar_lea.sflag [#allocation5], 1
    %778 = vsyncpa %s777, 1
    %779 = vsyncpa [#allocation8], 1
    %s780 = scalar_lea.sflag [#allocation8], 1
    %781 = vsyncpa %s780, 1
    %782 = vsyncpa [#allocation11], 1
    %783 = vsyncpa [#allocation6], 1
    %s784 = scalar_lea.sflag [#allocation6], 1
    %785 = vsyncpa %s784, 1

</llo_original>
